<compile_context>
chip_gen: v6e
topology: v6e:2x2x1
jax: 0.10.0
libtpu: 0.0.40
codegen_flags: <defaults>
</compile_context>

<pallas_src>
import jax
import jax.numpy as jnp
from jax import lax
from jax.experimental import pallas as pl
from jax.experimental.pallas import tpu as pltpu

KPAD = 128  # K*K*C = 36 zero-padded to one full MXU contraction width


def _octave_gemm_kernel(ph_ref, plo_ref, wh_ref, wl_ref, oh_ref, ol_ref):
    # high -> high: (Coh, 128) x (128, N*H*W)   -> lane-dense (Coh, N*H*W)
    oh_ref[...] = jnp.dot(wh_ref[...], ph_ref[...],
                          preferred_element_type=jnp.float32)
    # high -> low : (Col, 128) x (128, N*Hp*Wp) -> lane-dense (Col, N*Hp*Wp)
    ol_ref[...] = jnp.dot(wl_ref[...], plo_ref[...],
                          preferred_element_type=jnp.float32)


def _im2col_t(x_pad_nchw, Ho, Wo, K):
    """(N, C, Ho+K-1, Wo+K-1) -> (K*K*C, N*Ho*Wo), row order (kh, kw, c)."""
    N, C = x_pad_nchw.shape[:2]
    taps = [x_pad_nchw[:, :, kh:kh + Ho, kw:kw + Wo]
            for kh in range(K) for kw in range(K)]          # each (N, C, Ho, Wo)
    p = jnp.stack(taps, axis=0)                             # (K*K, N, C, Ho, Wo)
    p = jnp.transpose(p, (0, 2, 1, 3, 4))                   # (K*K, C, N, Ho, Wo)
    return p.reshape(K * K * C, N * Ho * Wo)


def _flatten_weight(w_oihw):
    """OIHW -> (O, KPAD): column order (kh, kw, c), zero-padded contraction."""
    O, C, K, _ = w_oihw.shape
    w = jnp.transpose(w_oihw, (0, 2, 3, 1)).reshape(O, K * K * C)
    return jnp.pad(w, ((0, 0), (0, KPAD - K * K * C)))


def octave_conv(x_nchw, w_h2h_oihw, w_h2l_oihw, *, padding=1):
    """OctaveConv.forward for alpha_in=0, alpha_out=0.5, stride=1, bias=False."""
    N, C, H, W = x_nchw.shape
    Coh, _, K, _ = w_h2h_oihw.shape
    Col = w_h2l_oihw.shape[0]
    assert K == 3 and padding == 1 and H % 2 == 0 and W % 2 == 0
    assert K * K * C <= KPAD
    Hp, Wp = H // 2, W // 2
    Mh, Ml = N * H * W, N * Hp * Wp          # 512, 128 here (lane-dense)

    x = x_nchw.astype(jnp.float32)
    pad = ((0, 0), (0, 0), (padding, padding), (padding, padding))

    # ---- wrapper-side layout plumbing: pad + im2col + 2x2 max-pool, in bf16 ----
    x_pad = jnp.pad(x, pad)
    ph = jnp.pad(_im2col_t(x_pad, H, W, K),
                 ((0, KPAD - K * K * C), (0, 0))).astype(jnp.bfloat16)

    pooled = x.reshape(N, C, Hp, 2, Wp, 2).max(axis=(3, 5))
    pooled_pad = jnp.pad(pooled, pad)
    plo = jnp.pad(_im2col_t(pooled_pad, Hp, Wp, K),
                  ((0, KPAD - K * K * C), (0, 0))).astype(jnp.bfloat16)

    wh = _flatten_weight(w_h2h_oihw).astype(jnp.bfloat16)    # (Coh, KPAD)
    wl = _flatten_weight(w_h2l_oihw).astype(jnp.bfloat16)    # (Col, KPAD)

    out_h, out_l = pl.pallas_call(
        _octave_gemm_kernel,
        out_shape=(
            jax.ShapeDtypeStruct((Coh, Mh), jnp.float32),
            jax.ShapeDtypeStruct((Col, Ml), jnp.float32),
        ),
        grid=(1,),
        in_specs=[
            pl.BlockSpec((KPAD, Mh), lambda i: (0, 0)),
            pl.BlockSpec((KPAD, Ml), lambda i: (0, 0)),
            pl.BlockSpec((Coh, KPAD), lambda i: (0, 0)),
            pl.BlockSpec((Col, KPAD), lambda i: (0, 0)),
        ],
        out_specs=(
            pl.BlockSpec((Coh, Mh), lambda i: (0, 0)),
            pl.BlockSpec((Col, Ml), lambda i: (0, 0)),
        ),
        compiler_params=pltpu.CompilerParams(
            dimension_semantics=("arbitrary",)),
    )(ph, plo, wh, wl)

    # lane-dense (Co, N*H*W) slabs -> NCHW (PyTorch convention)
    out_h = jnp.transpose(out_h.reshape(Coh, N, H, W), (1, 0, 2, 3))
    out_l = jnp.transpose(out_l.reshape(Col, N, Hp, Wp), (1, 0, 2, 3))
    return out_h, out_l


def _reference(x_nchw, w_h2h, w_h2l, padding=1):
    dn = ("NCHW", "OIHW", "NCHW")
    pad = ((padding, padding), (padding, padding))
    h2h = lax.conv_general_dilated(x_nchw, w_h2h, (1, 1), pad, dimension_numbers=dn)
    pooled = lax.reduce_window(x_nchw, -jnp.inf, lax.max,
                               (1, 1, 2, 2), (1, 1, 2, 2), "VALID")
    h2l = lax.conv_general_dilated(pooled, w_h2l, (1, 1), pad, dimension_numbers=dn)
    return h2h, h2l


if __name__ == "__main__":
    key = jax.random.PRNGKey(0)
    k1, k2, k3 = jax.random.split(key, 3)

    # module hyper-params
    N, Cin, H, W = 2, 4, 16, 16
    Cout, K, alpha_out = 8, 3, 0.5
    Col = int(alpha_out * Cout)          # conv_h2l out channels = 4
    Coh = Cout - Col                     # conv_h2h out channels = 4

    # deterministic synthetic parameters (PyTorch Conv2d OIHW layout, bias=False)
    x = jax.random.normal(k1, (N, Cin, H, W), jnp.float32)
    w_h2h = jax.random.normal(k2, (Coh, Cin, K, K), jnp.float32) * 0.1
    w_h2l = jax.random.normal(k3, (Col, Cin, K, K), jnp.float32) * 0.1

    out_h, out_l = octave_conv(x, w_h2h, w_h2l, padding=1)
    jax.block_until_ready((out_h, out_l))

    ref_h, ref_l = _reference(x, w_h2h, w_h2l, padding=1)
    assert out_h.shape == ref_h.shape and out_l.shape == ref_l.shape
    # tolerance accounts for bf16 input/weight cast (f32 accumulation on MXU)
    assert jnp.allclose(out_h, ref_h, atol=2e-2, rtol=2e-2)
    assert jnp.allclose(out_l, ref_l, atol=2e-2, rtol=2e-2)

    print("KERNEL_OK")
</pallas_src>

<mosaic_0001>
module attributes {stable_mosaic.version = 11 : i64} {
  func.func @_octave_gemm_kernel(%arg0: i32, %arg1: memref<128x512xbf16, #tpu.memory_space<vmem>>, %arg2: memref<128x128xbf16, #tpu.memory_space<vmem>>, %arg3: memref<4x128xbf16, #tpu.memory_space<vmem>>, %arg4: memref<4x128xbf16, #tpu.memory_space<vmem>>, %arg5: memref<4x512xf32, #tpu.memory_space<vmem>>, %arg6: memref<4x128xf32, #tpu.memory_space<vmem>>) attributes {dimension_semantics = [#tpu.dimension_semantics<arbitrary>], iteration_bounds = array<i64: 1>, scalar_prefetch = 0 : i64, scratch_operands = 0 : i64, tpu.core_type = #tpu.core_type<tc>, window_params = [{pipeline_mode = #tpu.pipeline_mode<synchronous>, transform_indices = @transform_0, window_bounds = array<i64: 128, 512>}, {pipeline_mode = #tpu.pipeline_mode<synchronous>, transform_indices = @transform_1, window_bounds = array<i64: 128, 128>}, {pipeline_mode = #tpu.pipeline_mode<synchronous>, transform_indices = @transform_2, window_bounds = array<i64: 4, 128>}, {pipeline_mode = #tpu.pipeline_mode<synchronous>, transform_indices = @transform_3, window_bounds = array<i64: 4, 128>}, {pipeline_mode = #tpu.pipeline_mode<synchronous>, transform_indices = @transform_4, window_bounds = array<i64: 4, 512>}, {pipeline_mode = #tpu.pipeline_mode<synchronous>, transform_indices = @transform_5, window_bounds = array<i64: 4, 128>}]} {
    %c0 = arith.constant 0 : index
    %c0_0 = arith.constant 0 : index
    %0 = vector.load %arg3[%c0, %c0_0] : memref<4x128xbf16, #tpu.memory_space<vmem>>, vector<4x128xbf16>
    %c0_1 = arith.constant 0 : index
    %c0_2 = arith.constant 0 : index
    %1 = vector.load %arg1[%c0_1, %c0_2] : memref<128x512xbf16, #tpu.memory_space<vmem>>, vector<128x512xbf16>
    %cst = arith.constant dense<0.000000e+00> : vector<4x512xf32>
    %2 = tpu.matmul %0, %1, %cst {dimension_numbers = #tpu.dot_dimension_numbers<[1], [0], [0], [1], [0, 0, 1, 1], [], []>} : vector<4x128xbf16>, vector<128x512xbf16>, vector<4x512xf32> -> vector<4x512xf32>
    %c0_3 = arith.constant 0 : index
    %c0_4 = arith.constant 0 : index
    %3 = vector.load %arg5[%c0_3, %c0_4] : memref<4x512xf32, #tpu.memory_space<vmem>>, vector<4x512xf32>
    tpu.vector_store %arg5[%c0_3, %c0_4], %2 {strides = array<i32>} : memref<4x512xf32, #tpu.memory_space<vmem>>, vector<4x512xf32>,
    %c0_5 = arith.constant 0 : index
    %c0_6 = arith.constant 0 : index
    %4 = vector.load %arg4[%c0_5, %c0_6] : memref<4x128xbf16, #tpu.memory_space<vmem>>, vector<4x128xbf16>
    %c0_7 = arith.constant 0 : index
    %c0_8 = arith.constant 0 : index
    %5 = vector.load %arg2[%c0_7, %c0_8] : memref<128x128xbf16, #tpu.memory_space<vmem>>, vector<128x128xbf16>
    %cst_9 = arith.constant dense<0.000000e+00> : vector<4x128xf32>
    %6 = tpu.matmul %4, %5, %cst_9 {dimension_numbers = #tpu.dot_dimension_numbers<[1], [0], [0], [1], [0, 0, 1, 1], [], []>} : vector<4x128xbf16>, vector<128x128xbf16>, vector<4x128xf32> -> vector<4x128xf32>
    %c0_10 = arith.constant 0 : index
    %c0_11 = arith.constant 0 : index
    %7 = vector.load %arg6[%c0_10, %c0_11] : memref<4x128xf32, #tpu.memory_space<vmem>>, vector<4x128xf32>
    tpu.vector_store %arg6[%c0_10, %c0_11], %6 {strides = array<i32>} : memref<4x128xf32, #tpu.memory_space<vmem>>, vector<4x128xf32>,
    return
  }
  func.func @transform_0(%arg0: i32) -> (i32, i32) {
    %c0_i32 = arith.constant 0 : i32
    %c0_i32_0 = arith.constant 0 : i32
    %c0_i32_1 = arith.constant 0 : i32
    return %c0_i32, %c0_i32_0 : i32, i32
  }
  func.func @transform_1(%arg0: i32) -> (i32, i32) {
    %c0_i32 = arith.constant 0 : i32
    %c0_i32_0 = arith.constant 0 : i32
    %c0_i32_1 = arith.constant 0 : i32
    return %c0_i32, %c0_i32_0 : i32, i32
  }
  func.func @transform_2(%arg0: i32) -> (i32, i32) {
    %c0_i32 = arith.constant 0 : i32
    %c0_i32_0 = arith.constant 0 : i32
    %c0_i32_1 = arith.constant 0 : i32
    return %c0_i32, %c0_i32_0 : i32, i32
  }
  func.func @transform_3(%arg0: i32) -> (i32, i32) {
    %c0_i32 = arith.constant 0 : i32
    %c0_i32_0 = arith.constant 0 : i32
    %c0_i32_1 = arith.constant 0 : i32
    return %c0_i32, %c0_i32_0 : i32, i32
  }
  func.func @transform_4(%arg0: i32) -> (i32, i32) {
    %c0_i32 = arith.constant 0 : i32
    %c0_i32_0 = arith.constant 0 : i32
    %c0_i32_1 = arith.constant 0 : i32
    return %c0_i32, %c0_i32_0 : i32, i32
  }
  func.func @transform_5(%arg0: i32) -> (i32, i32) {
    %c0_i32 = arith.constant 0 : i32
    %c0_i32_0 = arith.constant 0 : i32
    %c0_i32_1 = arith.constant 0 : i32
    return %c0_i32, %c0_i32_0 : i32, i32
  }
}

</mosaic_0001>

<llo_original>
// kernel: tpu_custom_call.1
$region0: #{tpu_custom_call.1}
  #allocation0 [shape = 'u32[]', space=smem, size = 0x4, offset = 0x4, fixed_abs, tag = 'smem constant byte address 0x4 - core index']
  #allocation1 [shape = 'u32[144,128]{1,0:T(1,128)}', space=vmem, size = 0x12000, scoped, tag = 'internal scratch']
  %s0 = inlined_call_operand.hbm [shape: bf16[128,512], index: 0, kind: input, shape index: {}]
  %s1 = inlined_call_operand.hbm [shape: bf16[128,128], index: 1, kind: input, shape index: {}]
  %s2 = inlined_call_operand.vmem [shape: bf16[4,128], index: 2, kind: input, shape index: {}]
  %s3 = inlined_call_operand.vmem [shape: bf16[4,128], index: 3, kind: input, shape index: {}]
  %s4 = inlined_call_operand.hbm [shape: f32[4,512], index: 4, kind: output, shape index: {0}]
  %s5 = inlined_call_operand.hbm [shape: f32[4,128], index: 5, kind: output, shape index: {1}]
  %6 = xla_tuple %s4, %s5
  %s7 = sld [smem:[#allocation0]]
  $region42: #{tpu_custom_call.1} parent=0
    _
  %s9 = ssub.s32 1, %s7
  %s10 = scalar_select 0, %s9, %s7
  $region1: #{tpu_custom_call.1} parent=0
    #allocation2 [shape = 'u8[131072]{0}', space=vmem, size = 0x20000, scoped, tag = 'input window, operand 0, single buffered']
    #allocation3 [shape = 's32[1]{0}', space=sflag, size = 0x4, scoped, tag = 'scoped memory for tpu_custom_call.1']
    #allocation4 [shape = 's32[1]{0}', space=sflag, size = 0x4, scoped, tag = 'scoped memory for tpu_custom_call.1']
    #allocation5 [shape = 'u8[32768]{0}', space=vmem, size = 0x8000, scoped, tag = 'input window, operand 1, single buffered']
    #allocation6 [shape = 's32[1]{0}', space=sflag, size = 0x4, scoped, tag = 'scoped memory for tpu_custom_call.1']
    #allocation7 [shape = 'u8[8192]{0}', space=vmem, size = 0x2000, scoped, tag = 'output window, operand 0, single buffered']
    #allocation8 [shape = 'u8[2048]{0}', space=vmem, size = 0x800, scoped, tag = 'output window, operand 1, single buffered']
    #allocation9 [shape = 's32[1]{0}', space=sflag, size = 0x4, scoped, tag = 'scoped memory for tpu_custom_call.1']
    %11 = vsyncpa [#allocation3], 0
    %12 = vsyncpa [#allocation6], 0
    %13 = vsyncpa [#allocation4], 0
    %14 = vsyncpa [#allocation9], 0
    // Predicated region
    $region2: #{tpu_custom_call.1} parent=1 // pred_check
      _
    $region3: #{tpu_custom_call.1} parent=1 // pred_check_branch
      %16 = sbr.rel (0) target = $region5
    $region4: #{tpu_custom_call.1} parent=1 // pred_region
      %s18 = ssub.s32 4096, 4096
      %19 = vsyncadd [#allocation3], %s18
      %s20 = sshll.u32 [#allocation2], 4
      %s21 = int_to_ptr.vmem [resolvable:$true] %s20
      %26 = dma.hbm_to_vmem [thread:$0]  %s0, 4096, %s21, [#allocation3], 256, 256, 16
    $region5: #{tpu_custom_call.1} parent=1 // pred_fallthru
      _
    // Predicated region
    $region6: #{tpu_custom_call.1} parent=1 // pred_check
      _
    $region7: #{tpu_custom_call.1} parent=1 // pred_check_branch
      %28 = sbr.rel (0) target = $region9
    $region8: #{tpu_custom_call.1} parent=1 // pred_region
      %s30 = ssub.s32 1024, 1024
      %31 = vsyncadd [#allocation6], %s30
      %s32 = sshll.u32 [#allocation5], 4
      %s33 = int_to_ptr.vmem [resolvable:$true] %s32
      %38 = dma.hbm_to_vmem [thread:$0]  %s1, 1024, %s33, [#allocation6], 64, 64, 4
    $region9: #{tpu_custom_call.1} parent=1 // pred_fallthru
      _
    // Predicated region
    $region10: #{tpu_custom_call.1} parent=1 // pred_check
      _
    $region11: #{tpu_custom_call.1} parent=1 // pred_check_branch
      %40 = sbr.rel (0) target = $region13
    $region12: #{tpu_custom_call.1} parent=1 // pred_region
      _
    $region13: #{tpu_custom_call.1} parent=1 // pred_fallthru
      _
    // Predicated region
    $region14: #{tpu_custom_call.1} parent=1 // pred_check
      _
    $region15: #{tpu_custom_call.1} parent=1 // pred_check_branch
      %42 = sbr.rel (0) target = $region17
    $region16: #{tpu_custom_call.1} parent=1 // pred_region
      _
    $region17: #{tpu_custom_call.1} parent=1 // pred_fallthru
      _
    // Predicated region
    $region18: #{tpu_custom_call.1} parent=1 // pred_check
      _
    $region19: #{tpu_custom_call.1} parent=1 // pred_check_branch
      %44 = sbr.rel (0) target = $region21
    $region20: #{tpu_custom_call.1} parent=1 // pred_region
      %45 = dma.done [#allocation3], 4096
    $region21: #{tpu_custom_call.1} parent=1 // pred_fallthru
      _
    // Predicated region
    $region22: #{tpu_custom_call.1} parent=1 // pred_check
      _
    $region23: #{tpu_custom_call.1} parent=1 // pred_check_branch
      %47 = sbr.rel (0) target = $region25
    $region24: #{tpu_custom_call.1} parent=1 // pred_region
      %48 = dma.done [#allocation6], 1024
    $region25: #{tpu_custom_call.1} parent=1 // pred_fallthru
      _
    %v50 = vld [vmem:[%s2] sm:$0x3]
    %v51 = vld [vmem:[#allocation2] sm:$0xff]
    %v52 = vld [vmem:[#allocation2 + $0x8] sm:$0xff]
    %v53 = vld [vmem:[#allocation2 + $0x10] sm:$0xff]
    %v54 = vld [vmem:[#allocation2 + $0x18] sm:$0xff]
    %v55 = vld [vmem:[#allocation2 + $0x20] sm:$0xff]
    %v56 = vld [vmem:[#allocation2 + $0x28] sm:$0xff]
    %v57 = vld [vmem:[#allocation2 + $0x30] sm:$0xff]
    %v58 = vld [vmem:[#allocation2 + $0x38] sm:$0xff]
    %v59 = vld [vmem:[#allocation2 + $0x40] sm:$0xff]
    %v60 = vld [vmem:[#allocation2 + $0x48] sm:$0xff]
    %v61 = vld [vmem:[#allocation2 + $0x50] sm:$0xff]
    %v62 = vld [vmem:[#allocation2 + $0x58] sm:$0xff]
    %v63 = vld [vmem:[#allocation2 + $0x60] sm:$0xff]
    %v64 = vld [vmem:[#allocation2 + $0x68] sm:$0xff]
    %v65 = vld [vmem:[#allocation2 + $0x70] sm:$0xff]
    %v66 = vld [vmem:[#allocation2 + $0x78] sm:$0xff]
    %v67 = vld [vmem:[#allocation2 + $0x80] sm:$0xff]
    %v68 = vld [vmem:[#allocation2 + $0x88] sm:$0xff]
    %v69 = vld [vmem:[#allocation2 + $0x90] sm:$0xff]
    %v70 = vld [vmem:[#allocation2 + $0x98] sm:$0xff]
    %v71 = vld [vmem:[#allocation2 + $0xa0] sm:$0xff]
    %v72 = vld [vmem:[#allocation2 + $0xa8] sm:$0xff]
    %v73 = vld [vmem:[#allocation2 + $0xb0] sm:$0xff]
    %v74 = vld [vmem:[#allocation2 + $0xb8] sm:$0xff]
    %v75 = vld [vmem:[#allocation2 + $0xc0] sm:$0xff]
    %v76 = vld [vmem:[#allocation2 + $0xc8] sm:$0xff]
    %v77 = vld [vmem:[#allocation2 + $0xd0] sm:$0xff]
    %v78 = vld [vmem:[#allocation2 + $0xd8] sm:$0xff]
    %v79 = vld [vmem:[#allocation2 + $0xe0] sm:$0xff]
    %v80 = vld [vmem:[#allocation2 + $0xe8] sm:$0xff]
    %v81 = vld [vmem:[#allocation2 + $0xf0] sm:$0xff]
    %v82 = vld [vmem:[#allocation2 + $0xf8] sm:$0xff]
    %v115 = vunpack.c.l.b16 %v51
    %v116 = vunpack.c.h.b16 %v51
    %v117 = vunpack.c.l.b16 %v52
    %v118 = vunpack.c.h.b16 %v52
    %v119 = vunpack.c.l.b16 %v53
    %v120 = vunpack.c.h.b16 %v53
    %v121 = vunpack.c.l.b16 %v54
    %v122 = vunpack.c.h.b16 %v54
    %v123 = vunpack.c.l.b16 %v55
    %v124 = vunpack.c.h.b16 %v55
    %v125 = vunpack.c.l.b16 %v56
    %v126 = vunpack.c.h.b16 %v56
    %v127 = vunpack.c.l.b16 %v57
    %v128 = vunpack.c.h.b16 %v57
    %v129 = vunpack.c.l.b16 %v58
    %v130 = vunpack.c.h.b16 %v58
    %v131 = vunpack.c.l.b16 %v59
    %v132 = vunpack.c.h.b16 %v59
    %v133 = vunpack.c.l.b16 %v60
    %v134 = vunpack.c.h.b16 %v60
    %v135 = vunpack.c.l.b16 %v61
    %v136 = vunpack.c.h.b16 %v61
    %v137 = vunpack.c.l.b16 %v62
    %v138 = vunpack.c.h.b16 %v62
    %v139 = vunpack.c.l.b16 %v63
    %v140 = vunpack.c.h.b16 %v63
    %v141 = vunpack.c.l.b16 %v64
    %v142 = vunpack.c.h.b16 %v64
    %v143 = vunpack.c.l.b16 %v65
    %v144 = vunpack.c.h.b16 %v65
    %v145 = vunpack.c.l.b16 %v66
    %v146 = vunpack.c.h.b16 %v66
    %v147 = vunpack.c.l.b16 %v67
    %v148 = vunpack.c.h.b16 %v67
    %v149 = vunpack.c.l.b16 %v68
    %v150 = vunpack.c.h.b16 %v68
    %v151 = vunpack.c.l.b16 %v69
    %v152 = vunpack.c.h.b16 %v69
    %v153 = vunpack.c.l.b16 %v70
    %v154 = vunpack.c.h.b16 %v70
    %v155 = vunpack.c.l.b16 %v71
    %v156 = vunpack.c.h.b16 %v71
    %v157 = vunpack.c.l.b16 %v72
    %v158 = vunpack.c.h.b16 %v72
    %v159 = vunpack.c.l.b16 %v73
    %v160 = vunpack.c.h.b16 %v73
    %v161 = vunpack.c.l.b16 %v74
    %v162 = vunpack.c.h.b16 %v74
    %v163 = vunpack.c.l.b16 %v75
    %v164 = vunpack.c.h.b16 %v75
    %v165 = vunpack.c.l.b16 %v76
    %v166 = vunpack.c.h.b16 %v76
    %v167 = vunpack.c.l.b16 %v77
    %v168 = vunpack.c.h.b16 %v77
    %v169 = vunpack.c.l.b16 %v78
    %v170 = vunpack.c.h.b16 %v78
    %v171 = vunpack.c.l.b16 %v79
    %v172 = vunpack.c.h.b16 %v79
    %v173 = vunpack.c.l.b16 %v80
    %v174 = vunpack.c.h.b16 %v80
    %v175 = vunpack.c.l.b16 %v81
    %v176 = vunpack.c.h.b16 %v81
    %v177 = vunpack.c.l.b16 %v82
    %v178 = vunpack.c.h.b16 %v82
    %v179 = vpack.c.b16 %v119, %v115
    %v180 = vpack.c.b16 %v120, %v116
    %v181 = vpack.c.b16 %v121, %v117
    %v182 = vpack.c.b16 %v122, %v118
    %v183 = vpack.c.b16 %v127, %v123
    %v184 = vpack.c.b16 %v128, %v124
    %v185 = vpack.c.b16 %v129, %v125
    %v186 = vpack.c.b16 %v130, %v126
    %v187 = vpack.c.b16 %v135, %v131
    %v188 = vpack.c.b16 %v136, %v132
    %v189 = vpack.c.b16 %v137, %v133
    %v190 = vpack.c.b16 %v138, %v134
    %v191 = vpack.c.b16 %v143, %v139
    %v192 = vpack.c.b16 %v144, %v140
    %v193 = vpack.c.b16 %v145, %v141
    %v194 = vpack.c.b16 %v146, %v142
    %v195 = vpack.c.b16 %v151, %v147
    %v196 = vpack.c.b16 %v152, %v148
    %v197 = vpack.c.b16 %v153, %v149
    %v198 = vpack.c.b16 %v154, %v150
    %v199 = vpack.c.b16 %v159, %v155
    %v200 = vpack.c.b16 %v160, %v156
    %v201 = vpack.c.b16 %v161, %v157
    %v202 = vpack.c.b16 %v162, %v158
    %v203 = vpack.c.b16 %v167, %v163
    %v204 = vpack.c.b16 %v168, %v164
    %v205 = vpack.c.b16 %v169, %v165
    %v206 = vpack.c.b16 %v170, %v166
    %v207 = vpack.c.b16 %v175, %v171
    %v208 = vpack.c.b16 %v176, %v172
    %v209 = vpack.c.b16 %v177, %v173
    %v210 = vpack.c.b16 %v178, %v174
    %243 = vmatprep.subr.bf16.mxu0 %v208
    %244 = vmatpush1.bf16.msra.mxu0 %v207
    %245 = vmatprep.subr.bf16.mxu0 %v204
    %246 = vmatpush1.bf16.msra.mxu0 %v203
    %247 = vmatprep.subr.bf16.mxu0 %v200
    %248 = vmatpush1.bf16.msra.mxu0 %v199
    %249 = vmatprep.subr.bf16.mxu0 %v196
    %250 = vmatpush1.bf16.msra.mxu0 %v195
    %251 = vmatprep.subr.bf16.mxu0 %v192
    %252 = vmatpush1.bf16.msra.mxu0 %v191
    %253 = vmatprep.subr.bf16.mxu0 %v188
    %254 = vmatpush1.bf16.msra.mxu0 %v187
    %255 = vmatprep.subr.bf16.mxu0 %v184
    %256 = vmatpush1.bf16.msra.mxu0 %v183
    %257 = vmatprep.subr.bf16.mxu0 %v180
    %258 = vmatpush1.bf16.msra.mxu0 %v179
    %259 = vmatprep.subr.bf16.mxu0 0
    %260 = vmatpush2.bf16.msra.mxu0 0
    %261 = vmatprep.subr.bf16.mxu0 0
    %262 = vmatpush2.bf16.msra.mxu0 0
    %263 = vmatprep.subr.bf16.mxu0 0
    %264 = vmatpush2.bf16.msra.mxu0 0
    %265 = vmatprep.subr.bf16.mxu0 0
    %266 = vmatpush2.bf16.msra.mxu0 0
    %267 = vmatprep.subr.bf16.mxu0 0
    %268 = vmatpush2.bf16.msra.mxu0 0
    %269 = vmatprep.subr.bf16.mxu0 0
    %270 = vmatpush2.bf16.msra.mxu0 0
    %271 = vmatprep.subr.bf16.mxu0 0
    %272 = vmatpush2.bf16.msra.mxu0 0
    %273 = vmatprep.subr.bf16.mxu0 0
    %274 = vmatpush2.bf16.msra.mxu0 0
    %275 = vmatprep.mubr.bf16.mxu0 0
    %276 = vmatmul.mubr.bf16.gmra.mxu0 %v50
    %v277 = vpop.f32.mrf.mxu0
    %v278 = vadd.f32 0.0, %v277
    %v279 = vpop.f32.mrf.mxu0
    %v280 = vadd.f32 0.0, %v279
    %v281 = vpop.f32.mrf.mxu0
    %v282 = vpop.f32.mrf.mxu0
    %283 = vdwg.mxu0
    %284 = vmatprep.subr.bf16.mxu0 %v210
    %285 = vmatpush1.bf16.msra.mxu0 %v209
    %286 = vmatprep.subr.bf16.mxu0 %v206
    %287 = vmatpush1.bf16.msra.mxu0 %v205
    %288 = vmatprep.subr.bf16.mxu0 %v202
    %289 = vmatpush1.bf16.msra.mxu0 %v201
    %290 = vmatprep.subr.bf16.mxu0 %v198
    %291 = vmatpush1.bf16.msra.mxu0 %v197
    %292 = vmatprep.subr.bf16.mxu0 %v194
    %293 = vmatpush1.bf16.msra.mxu0 %v193
    %294 = vmatprep.subr.bf16.mxu0 %v190
    %295 = vmatpush1.bf16.msra.mxu0 %v189
    %296 = vmatprep.subr.bf16.mxu0 %v186
    %297 = vmatpush1.bf16.msra.mxu0 %v185
    %298 = vmatprep.subr.bf16.mxu0 %v182
    %299 = vmatpush1.bf16.msra.mxu0 %v181
    %300 = vmatprep.subr.bf16.mxu0 0
    %301 = vmatpush2.bf16.msra.mxu0 0
    %302 = vmatprep.subr.bf16.mxu0 0
    %303 = vmatpush2.bf16.msra.mxu0 0
    %304 = vmatprep.subr.bf16.mxu0 0
    %305 = vmatpush2.bf16.msra.mxu0 0
    %306 = vmatprep.subr.bf16.mxu0 0
    %307 = vmatpush2.bf16.msra.mxu0 0
    %308 = vmatprep.subr.bf16.mxu0 0
    %309 = vmatpush2.bf16.msra.mxu0 0
    %310 = vmatprep.subr.bf16.mxu0 0
    %311 = vmatpush2.bf16.msra.mxu0 0
    %312 = vmatprep.subr.bf16.mxu0 0
    %313 = vmatpush2.bf16.msra.mxu0 0
    %314 = vmatprep.subr.bf16.mxu0 0
    %315 = vmatpush2.bf16.msra.mxu0 0
    %316 = vmatprep.mubr.bf16.mxu0 0
    %317 = vmatmul.mubr.bf16.gmra.mxu0 %v50
    %v318 = vpop.f32.mrf.mxu0
    %v319 = vadd.f32 0.0, %v318
    %v320 = vpop.f32.mrf.mxu0
    %v321 = vadd.f32 0.0, %v320
    %v322 = vpop.f32.mrf.mxu0
    %v323 = vpop.f32.mrf.mxu0
    %324 = vdwg.mxu0
    %v329 = vcombine.low %v278, %v280
    %v330 = vcombine.low %v319, %v321
    %333 = vst [vmem:[#allocation7] sm:$0xff] %v329
    %334 = vst [vmem:[#allocation7 + $0x8] sm:$0xff] %v330
    %v335 = vld [vmem:[%s3] sm:$0x3]
    %v336 = vld [vmem:[#allocation5] sm:$0xf]
    %v337 = vld [vmem:[#allocation5 + $0x4] sm:$0xf]
    %v338 = vld [vmem:[#allocation5 + $0x8] sm:$0xf]
    %v339 = vld [vmem:[#allocation5 + $0xc] sm:$0xf]
    %v340 = vld [vmem:[#allocation5 + $0x10] sm:$0xf]
    %v341 = vld [vmem:[#allocation5 + $0x14] sm:$0xf]
    %v342 = vld [vmem:[#allocation5 + $0x18] sm:$0xf]
    %v343 = vld [vmem:[#allocation5 + $0x1c] sm:$0xf]
    %v344 = vld [vmem:[#allocation5 + $0x20] sm:$0xf]
    %v345 = vld [vmem:[#allocation5 + $0x24] sm:$0xf]
    %v346 = vld [vmem:[#allocation5 + $0x28] sm:$0xf]
    %v347 = vld [vmem:[#allocation5 + $0x2c] sm:$0xf]
    %v348 = vld [vmem:[#allocation5 + $0x30] sm:$0xf]
    %v349 = vld [vmem:[#allocation5 + $0x34] sm:$0xf]
    %v350 = vld [vmem:[#allocation5 + $0x38] sm:$0xf]
    %v351 = vld [vmem:[#allocation5 + $0x3c] sm:$0xf]
    %v368 = vunpack.c.l.b16 %v336
    %v369 = vunpack.c.l.b16 %v337
    %v370 = vunpack.c.l.b16 %v338
    %v371 = vunpack.c.l.b16 %v339
    %v372 = vunpack.c.l.b16 %v340
    %v373 = vunpack.c.l.b16 %v341
    %v374 = vunpack.c.l.b16 %v342
    %v375 = vunpack.c.l.b16 %v343
    %v376 = vunpack.c.l.b16 %v344
    %v377 = vunpack.c.l.b16 %v345
    %v378 = vunpack.c.l.b16 %v346
    %v379 = vunpack.c.l.b16 %v347
    %v380 = vunpack.c.l.b16 %v348
    %v381 = vunpack.c.l.b16 %v349
    %v382 = vunpack.c.l.b16 %v350
    %v383 = vunpack.c.l.b16 %v351
    %v384 = vpack.c.b16 %v369, %v368
    %v385 = vpack.c.b16 %v371, %v370
    %v386 = vpack.c.b16 %v373, %v372
    %v387 = vpack.c.b16 %v375, %v374
    %v388 = vpack.c.b16 %v377, %v376
    %v389 = vpack.c.b16 %v379, %v378
    %v390 = vpack.c.b16 %v381, %v380
    %v391 = vpack.c.b16 %v383, %v382
    %400 = vmatprep.subr.bf16.mxu0 0
    %401 = vmatpush1.bf16.msra.mxu0 %v391
    %402 = vmatprep.subr.bf16.mxu0 0
    %403 = vmatpush1.bf16.msra.mxu0 %v390
    %404 = vmatprep.subr.bf16.mxu0 0
    %405 = vmatpush1.bf16.msra.mxu0 %v389
    %406 = vmatprep.subr.bf16.mxu0 0
    %407 = vmatpush1.bf16.msra.mxu0 %v388
    %408 = vmatprep.subr.bf16.mxu0 0
    %409 = vmatpush1.bf16.msra.mxu0 %v387
    %410 = vmatprep.subr.bf16.mxu0 0
    %411 = vmatpush1.bf16.msra.mxu0 %v386
    %412 = vmatprep.subr.bf16.mxu0 0
    %413 = vmatpush1.bf16.msra.mxu0 %v385
    %414 = vmatprep.subr.bf16.mxu0 0
    %415 = vmatpush1.bf16.msra.mxu0 %v384
    %416 = vmatprep.subr.bf16.mxu0 0
    %417 = vmatpush2.bf16.msra.mxu0 0
    %418 = vmatprep.subr.bf16.mxu0 0
    %419 = vmatpush2.bf16.msra.mxu0 0
    %420 = vmatprep.subr.bf16.mxu0 0
    %421 = vmatpush2.bf16.msra.mxu0 0
    %422 = vmatprep.subr.bf16.mxu0 0
    %423 = vmatpush2.bf16.msra.mxu0 0
    %424 = vmatprep.subr.bf16.mxu0 0
    %425 = vmatpush2.bf16.msra.mxu0 0
    %426 = vmatprep.subr.bf16.mxu0 0
    %427 = vmatpush2.bf16.msra.mxu0 0
    %428 = vmatprep.subr.bf16.mxu0 0
    %429 = vmatpush2.bf16.msra.mxu0 0
    %430 = vmatprep.subr.bf16.mxu0 0
    %431 = vmatpush2.bf16.msra.mxu0 0
    %432 = vmatprep.mubr.bf16.mxu0 0
    %433 = vmatmul.mubr.bf16.gmra.mxu0 %v335
    %v434 = vpop.f32.mrf.mxu0
    %v435 = vadd.f32 0.0, %v434
    %v436 = vpop.f32.mrf.mxu0
    %v437 = vpop.f32.mrf.mxu0
    %v438 = vpop.f32.mrf.mxu0
    %439 = vdwg.mxu0
    %440 = vst [vmem:[#allocation8] sm:$0xf] %v435
    // Predicated region
    $region26: #{tpu_custom_call.1} parent=1 // pred_check
      _
    $region27: #{tpu_custom_call.1} parent=1 // pred_check_branch
      %442 = sbr.rel (0) target = $region29
    $region28: #{tpu_custom_call.1} parent=1 // pred_region
      %s444 = ssub.s32 256, 256
      %445 = vsyncadd [#allocation4], %s444
      %s447 = sshll.u32 [#allocation7], 4
      %s448 = int_to_ptr.vmem [resolvable:$true] %s447
      %450 = dma.vmem_to_hbm [thread:$0]  %s448, 256, %s4, [#allocation4]
    $region29: #{tpu_custom_call.1} parent=1 // pred_fallthru
      _
    // Predicated region
    $region30: #{tpu_custom_call.1} parent=1 // pred_check
      _
    $region31: #{tpu_custom_call.1} parent=1 // pred_check_branch
      %452 = sbr.rel (0) target = $region33
    $region32: #{tpu_custom_call.1} parent=1 // pred_region
      %s454 = ssub.s32 64, 64
      %455 = vsyncadd [#allocation9], %s454
      %s457 = sshll.u32 [#allocation8], 4
      %s458 = int_to_ptr.vmem [resolvable:$true] %s457
      %460 = dma.vmem_to_hbm [thread:$0]  %s458, 64, %s5, [#allocation9]
    $region33: #{tpu_custom_call.1} parent=1 // pred_fallthru
      _
    // Predicated region
    $region34: #{tpu_custom_call.1} parent=1 // pred_check
      _
    $region35: #{tpu_custom_call.1} parent=1 // pred_check_branch
      %462 = sbr.rel (0) target = $region37
    $region36: #{tpu_custom_call.1} parent=1 // pred_region
      %463 = dma.done [#allocation4], 256
    $region37: #{tpu_custom_call.1} parent=1 // pred_fallthru
      _
    // Predicated region
    $region38: #{tpu_custom_call.1} parent=1 // pred_check
      _
    $region39: #{tpu_custom_call.1} parent=1 // pred_check_branch
      %465 = sbr.rel (0) target = $region41
    $region40: #{tpu_custom_call.1} parent=1 // pred_region
      %466 = dma.done [#allocation9], 64
    $region41: #{tpu_custom_call.1} parent=1 // pred_fallthru
      _
    %467 = vsyncpa [#allocation3], 1
    %468 = vsyncpa [#allocation6], 1
    %469 = vsyncpa [#allocation4], 1
    %470 = vsyncpa [#allocation9], 1

</llo_original>
